<compile_context>
chip_gen: v5e
topology: v5e:2x2
jax: 0.10.0
libtpu: 0.0.40
codegen_flags: <defaults>
</compile_context>

<pallas_src>
import jax
import jax.numpy as jnp
from jax.experimental import pallas as pl
from jax.experimental.pallas import tpu as pltpu


# ----------------------------------------------------------------------------- kernel


def _make_mlp_kernel(n_hidden_layers: int, matmul_dtype):
    """Pallas kernel: n_hidden_layers (Linear+Tanh) on the MXU, final 1-wide
    (Linear+Tanh) on VPU+XLU.  Activations are [features, row_tile]."""

    def kernel(x_ref, *args):
        # args = (W0, b0, ..., W_{n-2}, b_{n-2}, w_last_col, b_last, out_ref)
        out_ref = args[-1]
        params = args[:-1]

        # Rows on lanes, features on sublanes.  Keep activations in f32.
        h = x_ref[...].astype(jnp.float32)                      # [in_f, tile]

        # Hidden layers: bf16 MXU matmul with f32 accumulate, f32 bias + tanh.
        for i in range(n_hidden_layers):
            w = params[2 * i][...].astype(matmul_dtype)          # [out_f, in_f]
            b = params[2 * i + 1][...].astype(jnp.float32)       # [out_f, 1]
            z = jnp.dot(w, h.astype(matmul_dtype),
                        preferred_element_type=jnp.float32) + b  # MXU + VPU
            h = jnp.tanh(z)                                      # EUP, f32

        # Final [1, in_f] layer off the MXU: per-sublane scale (VPU) +
        # cross-sublane reduction over features (XLU) + bias + tanh, all f32.
        w_last = params[-2][...].astype(jnp.float32)             # [in_f, 1]
        b_last = params[-1][...].astype(jnp.float32)             # [1, 1]
        y = jnp.sum(h * w_last, axis=0, keepdims=True) + b_last  # [1, tile]
        out_ref[...] = jnp.tanh(y).astype(out_ref.dtype)         # lane-dense store

    return kernel


# ----------------------------------------------------------------------------- helpers


def _min_grid_steps() -> int:
    """v7x has 2 TensorCores sharing the 'parallel' grid -> keep >= 2 steps per
    core (4 total) when the problem is big enough; 1-TC chips only need 2."""
    try:
        kind = jax.devices()[0].device_kind.lower()
    except Exception:
        return 2
    return 4 if "v7" in kind else 2


def _choose_row_tile(n_rows: int, desired: int, min_steps: int) -> int:
    """Rows per grid step: multiple of 128, large (amortize ~0.35us/step), but
    capped so the grid keeps >= min_steps steps and VMEM stays modest."""
    desired = max(128, (desired // 128) * 128)
    desired = min(desired, 32768)            # keeps per-step VMEM < ~20 MiB
    n_blocks = pl.cdiv(n_rows, 128)          # number of 128-row lane blocks
    if n_blocks <= min_steps:
        return 128
    cap = max(128, (n_blocks // min_steps) * 128)
    return min(desired, cap)


# ----------------------------------------------------------------------------- wrapper


def react_nn_forward(x, weights, biases, *, row_tile=None,
                     matmul_dtype=jnp.bfloat16):
    """
    Apply the React_NN MLP.

    Args:
      x            : [Nx, Ny, num_vars] input.
      weights      : list of arrays, weights[i] torch-native [out_i, in_i].
      biases       : list of arrays, biases[i] shape [out_i].
      row_tile     : desired rows per kernel step (auto if None; clamped to 32768).
      matmul_dtype : dtype of MXU inputs (bf16 default; f32 for exact testing).
                     Accumulation, bias add and tanh are always f32.

    Returns:
      [Nx, Ny, 1] output (dtype of x).
    """
    nx, ny, num_vars = x.shape
    n_rows = nx * ny
    n_layers_total = len(weights)

    desired = 16384 if row_tile is None else int(row_tile)
    tile = _choose_row_tile(n_rows, desired, _min_grid_steps())
    grid = (pl.cdiv(n_rows, tile),)          # ragged last block handled by Pallas

    # [num_vars, n_rows]: rows land on the lane axis inside the kernel.
    xt = x.reshape(n_rows, num_vars).T

    in_specs = [pl.BlockSpec((num_vars, tile), lambda i: (0, i))]
    param_args = []

    # Hidden layers: weights torch-native [out_f, in_f], biases as [out_f, 1].
    for w, b in zip(weights[:-1], biases[:-1]):
        b2 = b.reshape(-1, 1).astype(jnp.float32)
        in_specs.append(pl.BlockSpec(w.shape, lambda i: (0, 0)))   # resident
        in_specs.append(pl.BlockSpec(b2.shape, lambda i: (0, 0)))  # resident
        param_args += [w, b2]

    # Final layer: weight as a column [in_f, 1] so it broadcasts against
    # h [in_f, tile] for the VPU+XLU path; bias as [1, 1].
    w_last = weights[-1].reshape(-1, 1).astype(jnp.float32)
    b_last = biases[-1].reshape(1, 1).astype(jnp.float32)
    in_specs.append(pl.BlockSpec(w_last.shape, lambda i: (0, 0)))
    in_specs.append(pl.BlockSpec(b_last.shape, lambda i: (0, 0)))
    param_args += [w_last, b_last]

    # Lane-dense output: [1, n_rows] with a (1, tile) block -> unmasked stores
    # for all full blocks; the ragged last block (if any) is masked by Pallas.
    out_spec = pl.BlockSpec((1, tile), lambda i: (0, i))

    kernel = _make_mlp_kernel(n_layers_total - 1, matmul_dtype)

    out = pl.pallas_call(
        kernel,
        out_shape=jax.ShapeDtypeStruct((1, n_rows), x.dtype),
        grid_spec=pltpu.PrefetchScalarGridSpec(
            num_scalar_prefetch=0,
            grid=grid,
            in_specs=in_specs,
            out_specs=out_spec,
        ),
        compiler_params=pltpu.CompilerParams(
            dimension_semantics=("parallel",),
            # Explicit scoped-VMEM budget: safe on every generation
            # (v5e default is only 16 MiB; v6e/v7x default 32 MiB).
            vmem_limit_bytes=32 * 1024 * 1024,
        ),
    )(xt, *param_args)

    return out[0].reshape(nx, ny, 1)


# ----------------------------------------------------------------------------- init / ref


def init_react_nn_params(key, num_layers, num_nodes, num_vars, dtype=jnp.float32):
    """Init mimicking torch.nn.Linear default (U[-1/sqrt(fan_in), +1/sqrt(fan_in)]).
    Weights are stored torch-native as [out_features, in_features]."""
    weights, biases = [], []
    for i in range(num_layers + 1):
        in_f = num_vars if i == 0 else num_nodes
        out_f = 1 if i == num_layers else num_nodes
        key, kw, kb = jax.random.split(key, 3)
        bound = 1.0 / jnp.sqrt(in_f)
        w = jax.random.uniform(kw, (out_f, in_f), dtype, minval=-bound, maxval=bound)
        b = jax.random.uniform(kb, (out_f,), dtype, minval=-bound, maxval=bound)
        weights.append(w)
        biases.append(b)
    return weights, biases


def react_nn_reference(x, weights, biases):
    """Pure-JAX reference (matches PyTorch semantics)."""
    h = x
    for w, b in zip(weights, biases):
        h = jnp.tanh(jnp.dot(h, w.T) + b)
    return h


# ----------------------------------------------------------------------------- main


if __name__ == "__main__":
    num_layers, num_nodes, num_vars = 2, 32, 4

    key = jax.random.PRNGKey(0)
    key, kx = jax.random.split(key)
    weights, biases = init_react_nn_params(key, num_layers, num_nodes, num_vars)

    # ---- Case 1: aligned grid (16x16 = 256 rows -> two 128-row steps) ----
    x = jax.random.normal(kx, (16, 16, num_vars), dtype=jnp.float32)
    ref = react_nn_reference(x, weights, biases)

    # f32-matmul path: tight structural check against the reference.
    out_f32 = jax.block_until_ready(
        react_nn_forward(x, weights, biases, matmul_dtype=jnp.float32)
    )
    assert out_f32.shape == (16, 16, 1), out_f32.shape
    assert jnp.allclose(out_f32, ref, atol=1e-4, rtol=1e-4), float(
        jnp.max(jnp.abs(out_f32 - ref))
    )

    # Default path (bf16 MXU inputs, f32 accumulate/bias/tanh): relaxed check.
    out_def = jax.block_until_ready(react_nn_forward(x, weights, biases))
    assert out_def.shape == (16, 16, 1), out_def.shape
    assert jnp.allclose(out_def, ref, atol=5e-2, rtol=5e-2), float(
        jnp.max(jnp.abs(out_def - ref))
    )

    # ---- Case 2: ragged rows (13x11 = 143 rows, no host-side padding) ----
    key, kx2 = jax.random.split(key)
    x2 = jax.random.normal(kx2, (13, 11, num_vars), dtype=jnp.float32)
    ref2 = react_nn_reference(x2, weights, biases)
    out2 = jax.block_until_ready(
        react_nn_forward(x2, weights, biases, matmul_dtype=jnp.float32)
    )
    assert out2.shape == (13, 11, 1), out2.shape
    assert jnp.allclose(out2, ref2, atol=1e-4, rtol=1e-4), float(
        jnp.max(jnp.abs(out2 - ref2))
    )

    print("KERNEL_OK")
</pallas_src>

<mosaic_0001>
module attributes {stable_mosaic.version = 11 : i64} {
  func.func @kernel(%arg0: i32, %arg1: memref<4x128xf32, #tpu.memory_space<vmem>>, %arg2: memref<32x4xf32, #tpu.memory_space<vmem>>, %arg3: memref<32x1xf32, #tpu.memory_space<vmem>>, %arg4: memref<32x32xf32, #tpu.memory_space<vmem>>, %arg5: memref<32x1xf32, #tpu.memory_space<vmem>>, %arg6: memref<32x1xf32, #tpu.memory_space<vmem>>, %arg7: memref<1x1xf32, #tpu.memory_space<vmem>>, %arg8: memref<1x128xf32, #tpu.memory_space<vmem>>) attributes {dimension_semantics = [#tpu.dimension_semantics<parallel>], iteration_bounds = array<i64: 2>, scalar_prefetch = 0 : i64, scratch_operands = 0 : i64, tpu.core_type = #tpu.core_type<tc>, window_params = [{transform_indices = @transform_0, window_bounds = array<i64: 4, 128>}, {pipeline_mode = #tpu.pipeline_mode<synchronous>, transform_indices = @transform_1, window_bounds = array<i64: 32, 4>}, {pipeline_mode = #tpu.pipeline_mode<synchronous>, transform_indices = @transform_2, window_bounds = array<i64: 32, 1>}, {pipeline_mode = #tpu.pipeline_mode<synchronous>, transform_indices = @transform_3, window_bounds = array<i64: 32, 32>}, {pipeline_mode = #tpu.pipeline_mode<synchronous>, transform_indices = @transform_4, window_bounds = array<i64: 32, 1>}, {pipeline_mode = #tpu.pipeline_mode<synchronous>, transform_indices = @transform_5, window_bounds = array<i64: 32, 1>}, {pipeline_mode = #tpu.pipeline_mode<synchronous>, transform_indices = @transform_6, window_bounds = array<i64: 1, 1>}, {transform_indices = @transform_7, window_bounds = array<i64: 1, 128>}]} {
    %c0 = arith.constant 0 : index
    %c0_0 = arith.constant 0 : index
    %0 = vector.load %arg1[%c0, %c0_0] : memref<4x128xf32, #tpu.memory_space<vmem>>, vector<4x128xf32>
    %c0_1 = arith.constant 0 : index
    %c0_2 = arith.constant 0 : index
    %1 = vector.load %arg2[%c0_1, %c0_2] : memref<32x4xf32, #tpu.memory_space<vmem>>, vector<32x4xf32>
    %c0_3 = arith.constant 0 : index
    %c0_4 = arith.constant 0 : index
    %2 = vector.load %arg3[%c0_3, %c0_4] : memref<32x1xf32, #tpu.memory_space<vmem>>, vector<32x1xf32>
    %cst = arith.constant dense<0.000000e+00> : vector<32x128xf32>
    %3 = tpu.matmul %1, %0, %cst {dimension_numbers = #tpu.dot_dimension_numbers<[1], [0], [0], [1], [0, 0, 1, 1], [], []>} : vector<32x4xf32>, vector<4x128xf32>, vector<32x128xf32> -> vector<32x128xf32>
    %4 = vector.broadcast %2 : vector<32x1xf32> to vector<32x128xf32>
    %5 = arith.addf %3, %4 : vector<32x128xf32>
    %6 = math.tanh %5 : vector<32x128xf32>
    %c0_5 = arith.constant 0 : index
    %c0_6 = arith.constant 0 : index
    %7 = vector.load %arg4[%c0_5, %c0_6] : memref<32x32xf32, #tpu.memory_space<vmem>>, vector<32x32xf32>
    %c0_7 = arith.constant 0 : index
    %c0_8 = arith.constant 0 : index
    %8 = vector.load %arg5[%c0_7, %c0_8] : memref<32x1xf32, #tpu.memory_space<vmem>>, vector<32x1xf32>
    %cst_9 = arith.constant dense<0.000000e+00> : vector<32x128xf32>
    %9 = tpu.matmul %7, %6, %cst_9 {dimension_numbers = #tpu.dot_dimension_numbers<[1], [0], [0], [1], [0, 0, 1, 1], [], []>} : vector<32x32xf32>, vector<32x128xf32>, vector<32x128xf32> -> vector<32x128xf32>
    %10 = vector.broadcast %8 : vector<32x1xf32> to vector<32x128xf32>
    %11 = arith.addf %9, %10 : vector<32x128xf32>
    %12 = math.tanh %11 : vector<32x128xf32>
    %c0_10 = arith.constant 0 : index
    %c0_11 = arith.constant 0 : index
    %13 = vector.load %arg6[%c0_10, %c0_11] : memref<32x1xf32, #tpu.memory_space<vmem>>, vector<32x1xf32>
    %c0_12 = arith.constant 0 : index
    %c0_13 = arith.constant 0 : index
    %14 = vector.load %arg7[%c0_12, %c0_13] : memref<1x1xf32, #tpu.memory_space<vmem>>, vector<1x1xf32>
    %15 = vector.broadcast %13 : vector<32x1xf32> to vector<32x128xf32>
    %16 = arith.mulf %12, %15 : vector<32x128xf32>
    %cst_14 = arith.constant dense<0.000000e+00> : vector<128xf32>
    %17 = vector.multi_reduction <add>, %16, %cst_14 [0] : vector<32x128xf32> to vector<128xf32>
    %18 = vector.shape_cast %17 : vector<128xf32> to vector<1x128xf32>
    %19 = vector.broadcast %14 : vector<1x1xf32> to vector<1x128xf32>
    %20 = arith.addf %18, %19 : vector<1x128xf32>
    %21 = math.tanh %20 : vector<1x128xf32>
    %c0_15 = arith.constant 0 : index
    %c0_16 = arith.constant 0 : index
    %22 = vector.load %arg8[%c0_15, %c0_16] : memref<1x128xf32, #tpu.memory_space<vmem>>, vector<1x128xf32>
    tpu.vector_store %arg8[%c0_15, %c0_16], %21 {strides = array<i32>} : memref<1x128xf32, #tpu.memory_space<vmem>>, vector<1x128xf32>,
    return
  }
  func.func @transform_0(%arg0: i32) -> (i32, i32) {
    %c0_i32 = arith.constant 0 : i32
    %c0_i32_0 = arith.constant 0 : i32
    return %c0_i32, %arg0 : i32, i32
  }
  func.func @transform_1(%arg0: i32) -> (i32, i32) {
    %c0_i32 = arith.constant 0 : i32
    %c0_i32_0 = arith.constant 0 : i32
    %c0_i32_1 = arith.constant 0 : i32
    return %c0_i32, %c0_i32_0 : i32, i32
  }
  func.func @transform_2(%arg0: i32) -> (i32, i32) {
    %c0_i32 = arith.constant 0 : i32
    %c0_i32_0 = arith.constant 0 : i32
    %c0_i32_1 = arith.constant 0 : i32
    return %c0_i32, %c0_i32_0 : i32, i32
  }
  func.func @transform_3(%arg0: i32) -> (i32, i32) {
    %c0_i32 = arith.constant 0 : i32
    %c0_i32_0 = arith.constant 0 : i32
    %c0_i32_1 = arith.constant 0 : i32
    return %c0_i32, %c0_i32_0 : i32, i32
  }
  func.func @transform_4(%arg0: i32) -> (i32, i32) {
    %c0_i32 = arith.constant 0 : i32
    %c0_i32_0 = arith.constant 0 : i32
    %c0_i32_1 = arith.constant 0 : i32
    return %c0_i32, %c0_i32_0 : i32, i32
  }
  func.func @transform_5(%arg0: i32) -> (i32, i32) {
    %c0_i32 = arith.constant 0 : i32
    %c0_i32_0 = arith.constant 0 : i32
    %c0_i32_1 = arith.constant 0 : i32
    return %c0_i32, %c0_i32_0 : i32, i32
  }
  func.func @transform_6(%arg0: i32) -> (i32, i32) {
    %c0_i32 = arith.constant 0 : i32
    %c0_i32_0 = arith.constant 0 : i32
    %c0_i32_1 = arith.constant 0 : i32
    return %c0_i32, %c0_i32_0 : i32, i32
  }
  func.func @transform_7(%arg0: i32) -> (i32, i32) {
    %c0_i32 = arith.constant 0 : i32
    %c0_i32_0 = arith.constant 0 : i32
    return %c0_i32, %arg0 : i32, i32
  }
}

</mosaic_0001>

<llo_original>
// kernel: tpu_custom_call.1
$region0: #{tpu_custom_call.1}
  #allocation0 [shape = 'u32[]', space=smem, size = 0x4, offset = 0x4, fixed_abs, tag = 'smem constant byte address 0x4 - core index']
  #allocation1 [shape = 'u32[72,128]{1,0:T(1,128)}', space=vmem, size = 0x9000, scoped, tag = 'internal scratch']
  #allocation2 [shape = 'f32[1,1]{1,0:T(1,128)S(1)}', space=vmem, size = 0x200, scoped, tag = 'scoped memory for tpu_custom_call.1']
  %s0 = inlined_call_operand.vmem [shape: f32[4,256], index: 0, kind: input, shape index: {}]
  %s1 = inlined_call_operand.vmem [shape: f32[32,4], index: 1, kind: input, shape index: {}]
  %s2 = inlined_call_operand.vmem [shape: f32[32,1], index: 2, kind: input, shape index: {}]
  %s3 = inlined_call_operand.vmem [shape: f32[32,32], index: 3, kind: input, shape index: {}]
  %s4 = inlined_call_operand.vmem [shape: f32[32,1], index: 4, kind: input, shape index: {}]
  %s5 = inlined_call_operand.vmem [shape: f32[32,1], index: 5, kind: input, shape index: {}]
  %s6 = inlined_call_operand.<no memory space> [shape: f32[1,1], index: 6, kind: input, shape index: {}]
  %s7 = inlined_call_operand.hbm [shape: f32[1,256], index: 7, kind: output, shape index: {}]
  %s8 = sld [smem:[#allocation0]]
  $region61: #{tpu_custom_call.1} parent=0
    _
  %s10 = ssub.s32 1, %s8
  %s11 = scalar_select 0, %s10, %s8
  %v12 = vstv %s6
  %13 = vst [vmem:[#allocation2] sm:$0x1] %v12
  $region1: #{tpu_custom_call.1} parent=0
    #allocation3 [shape = 'u8[1024]{0}', space=vmem, size = 0x400, scoped, tag = 'output window, operand 0']
    #allocation4 [shape = 's32[2]{0}', space=sflag, size = 0x8, scoped, tag = 'scoped memory for tpu_custom_call.1']
    %14 = vsyncpa [#allocation4], 0
    %s15 = scalar_lea.sflag [#allocation4], 1
    %16 = vsyncpa %s15, 0
    loop: start=0, step=1, limit=4
    $region2: #{tpu_custom_call.1} parent=1 // loop_pre_header
      _
    $region3: #{tpu_custom_call.1} parent=1 // loop_header
      %s18 = sphi 0, %s22
      %p19 = scmp.ge.s32.totalorder %s18, 4
      %s28 = sphi 0, %s30
      %s31 = sphi 0, %s28
      %s32 = sphi 0, %s31
      %s48 = sphi 0, %s32
      %s52 = sphi 0, %s52
      %s54 = sphi 0, %s52
      %s55 = sphi 0, %s54
      %s69 = sphi 0, %s55
      %s73 = sphi 0, %s73
      %s75 = sphi 0, %s73
      %s76 = sphi 0, %s75
      %s90 = sphi 0, %s76
      %s94 = sphi 0, %s94
      %s96 = sphi 0, %s94
      %s97 = sphi 0, %s96
      %s111 = sphi 0, %s97
      %s115 = sphi 0, %s115
      %s117 = sphi 0, %s115
      %s118 = sphi 0, %s117
      %s132 = sphi 0, %s118
      %s136 = sphi 0, %s136
      %s138 = sphi 0, %s136
      %s139 = sphi 0, %s138
      %s153 = sphi 0, %s139
      %s157 = sphi 0, %s157
      %s159 = sphi 0, %s157
      %s160 = sphi 0, %s159
      %s174 = sphi 0, %s160
      %s180 = sphi 0, %s182
      %s183 = sphi 0, %s180
      %s184 = sphi 0, %s183
      %s200 = sphi 0, %s184
    $region4: #{tpu_custom_call.1} parent=1 // loop_header_branch
      %21 = sbr.rel (%p19) target = $region8
    $region5: #{tpu_custom_call.1} parent=1 // loop_body
      %s23 = ssub.s32 %s18, 1
      %s24 = ssub.s32 %s18, 2
      %s25 = sadd.s32 %s18, 1
      %s26 = ssub.s32 %s18, %s25
      %p27 = scmp.eq.s32.totalorder %s26, 0
      %s29 = sadd.s32 %s28, 1
      %s30 = scalar_select %p27, %s28, %s29
      %p33 = pneg %p27
      %p34 = scmp.eq.s32.totalorder %s18, 1
      %p35 = por %p33, %p34
      %p36 = scmp.ne.s32.totalorder %s28, %s31
      %p37 = scmp.eq.s32.totalorder %s18, 0
      %p38 = por %p36, %p37
      %p39 = scmp.ne.s32.totalorder %s28, %s31
      %p40 = scmp.eq.s32.totalorder %s23, 1
      %p41 = por %p39, %p40
      %p42 = scmp.ne.s32.totalorder %s31, %s32
      %p43 = scmp.eq.s32.totalorder %s23, 0
      %p44 = por %p42, %p43
      %p45 = scmp.ne.s32.totalorder %s31, %s32
      %p46 = scmp.eq.s32.totalorder %s24, 1
      %p47 = por %p45, %p46
      %p49 = scmp.ne.s32.totalorder %s32, %s48
      %p50 = scmp.eq.s32.totalorder %s24, 0
      %p51 = por %p49, %p50
      %s53 = sadd.s32 %s52, 1
      %p56 = scmp.eq.s32.totalorder %s18, 1
      %p57 = scmp.ne.s32.totalorder %s52, %s54
      %p58 = scmp.eq.s32.totalorder %s18, 0
      %p59 = por %p57, %p58
      %p60 = scmp.ne.s32.totalorder %s52, %s54
      %p61 = scmp.eq.s32.totalorder %s23, 1
      %p62 = por %p60, %p61
      %p63 = scmp.ne.s32.totalorder %s54, %s55
      %p64 = scmp.eq.s32.totalorder %s23, 0
      %p65 = por %p63, %p64
      %p66 = scmp.ne.s32.totalorder %s54, %s55
      %p67 = scmp.eq.s32.totalorder %s24, 1
      %p68 = por %p66, %p67
      %p70 = scmp.ne.s32.totalorder %s55, %s69
      %p71 = scmp.eq.s32.totalorder %s24, 0
      %p72 = por %p70, %p71
      %s74 = sadd.s32 %s73, 1
      %p77 = scmp.eq.s32.totalorder %s18, 1
      %p78 = scmp.ne.s32.totalorder %s73, %s75
      %p79 = scmp.eq.s32.totalorder %s18, 0
      %p80 = por %p78, %p79
      %p81 = scmp.ne.s32.totalorder %s73, %s75
      %p82 = scmp.eq.s32.totalorder %s23, 1
      %p83 = por %p81, %p82
      %p84 = scmp.ne.s32.totalorder %s75, %s76
      %p85 = scmp.eq.s32.totalorder %s23, 0
      %p86 = por %p84, %p85
      %p87 = scmp.ne.s32.totalorder %s75, %s76
      %p88 = scmp.eq.s32.totalorder %s24, 1
      %p89 = por %p87, %p88
      %p91 = scmp.ne.s32.totalorder %s76, %s90
      %p92 = scmp.eq.s32.totalorder %s24, 0
      %p93 = por %p91, %p92
      %s95 = sadd.s32 %s94, 1
      %p98 = scmp.eq.s32.totalorder %s18, 1
      %p99 = scmp.ne.s32.totalorder %s94, %s96
      %p100 = scmp.eq.s32.totalorder %s18, 0
      %p101 = por %p99, %p100
      %p102 = scmp.ne.s32.totalorder %s94, %s96
      %p103 = scmp.eq.s32.totalorder %s23, 1
      %p104 = por %p102, %p103
      %p105 = scmp.ne.s32.totalorder %s96, %s97
      %p106 = scmp.eq.s32.totalorder %s23, 0
      %p107 = por %p105, %p106
      %p108 = scmp.ne.s32.totalorder %s96, %s97
      %p109 = scmp.eq.s32.totalorder %s24, 1
      %p110 = por %p108, %p109
      %p112 = scmp.ne.s32.totalorder %s97, %s111
      %p113 = scmp.eq.s32.totalorder %s24, 0
      %p114 = por %p112, %p113
      %s116 = sadd.s32 %s115, 1
      %p119 = scmp.eq.s32.totalorder %s18, 1
      %p120 = scmp.ne.s32.totalorder %s115, %s117
      %p121 = scmp.eq.s32.totalorder %s18, 0
      %p122 = por %p120, %p121
      %p123 = scmp.ne.s32.totalorder %s115, %s117
      %p124 = scmp.eq.s32.totalorder %s23, 1
      %p125 = por %p123, %p124
      %p126 = scmp.ne.s32.totalorder %s117, %s118
      %p127 = scmp.eq.s32.totalorder %s23, 0
      %p128 = por %p126, %p127
      %p129 = scmp.ne.s32.totalorder %s117, %s118
      %p130 = scmp.eq.s32.totalorder %s24, 1
      %p131 = por %p129, %p130
      %p133 = scmp.ne.s32.totalorder %s118, %s132
      %p134 = scmp.eq.s32.totalorder %s24, 0
      %p135 = por %p133, %p134
      %s137 = sadd.s32 %s136, 1
      %p140 = scmp.eq.s32.totalorder %s18, 1
      %p141 = scmp.ne.s32.totalorder %s136, %s138
      %p142 = scmp.eq.s32.totalorder %s18, 0
      %p143 = por %p141, %p142
      %p144 = scmp.ne.s32.totalorder %s136, %s138
      %p145 = scmp.eq.s32.totalorder %s23, 1
      %p146 = por %p144, %p145
      %p147 = scmp.ne.s32.totalorder %s138, %s139
      %p148 = scmp.eq.s32.totalorder %s23, 0
      %p149 = por %p147, %p148
      %p150 = scmp.ne.s32.totalorder %s138, %s139
      %p151 = scmp.eq.s32.totalorder %s24, 1
      %p152 = por %p150, %p151
      %p154 = scmp.ne.s32.totalorder %s139, %s153
      %p155 = scmp.eq.s32.totalorder %s24, 0
      %p156 = por %p154, %p155
      %s158 = sadd.s32 %s157, 1
      %p161 = scmp.eq.s32.totalorder %s18, 1
      %p162 = scmp.ne.s32.totalorder %s157, %s159
      %p163 = scmp.eq.s32.totalorder %s18, 0
      %p164 = por %p162, %p163
      %p165 = scmp.ne.s32.totalorder %s157, %s159
      %p166 = scmp.eq.s32.totalorder %s23, 1
      %p167 = por %p165, %p166
      %p168 = scmp.ne.s32.totalorder %s159, %s160
      %p169 = scmp.eq.s32.totalorder %s23, 0
      %p170 = por %p168, %p169
      %p171 = scmp.ne.s32.totalorder %s159, %s160
      %p172 = scmp.eq.s32.totalorder %s24, 1
      %p173 = por %p171, %p172
      %p175 = scmp.ne.s32.totalorder %s160, %s174
      %p176 = scmp.eq.s32.totalorder %s24, 0
      %p177 = por %p175, %p176
      %s178 = ssub.s32 %s18, %s25
      %p179 = scmp.eq.s32.totalorder %s178, 0
      %s181 = sadd.s32 %s180, 1
      %s182 = scalar_select %p179, %s180, %s181
      %p185 = pneg %p179
      %p186 = scmp.eq.s32.totalorder %s18, 1
      %p187 = por %p185, %p186
      %p188 = scmp.ne.s32.totalorder %s180, %s183
      %p189 = scmp.eq.s32.totalorder %s18, 0
      %p190 = por %p188, %p189
      %p191 = scmp.ne.s32.totalorder %s180, %s183
      %p192 = scmp.eq.s32.totalorder %s23, 1
      %p193 = por %p191, %p192
      %p194 = scmp.ne.s32.totalorder %s183, %s184
      %p195 = scmp.eq.s32.totalorder %s23, 0
      %p196 = por %p194, %p195
      %p197 = scmp.ne.s32.totalorder %s183, %s184
      %p198 = scmp.eq.s32.totalorder %s24, 1
      %p199 = por %p197, %p198
      %p201 = scmp.ne.s32.totalorder %s184, %s200
      %p202 = scmp.eq.s32.totalorder %s24, 0
      %p203 = por %p201, %p202
      %p204 = scmp.le.s32.totalorder 1, %s18
      %p205 = scmp.lt.s32.totalorder %s18, 3
      %p206 = pnand %p204, %p205
      %p207 = pneg %p206
      // Predicated region
      $region9: #{tpu_custom_call.1} parent=5 // pred_check
        _
      $region10: #{tpu_custom_call.1} parent=5 // pred_check_branch
        %209 = sbr.rel (%p206) target = $region12
      $region11: #{tpu_custom_call.1} parent=5 // pred_region
        %s210 = ssub.s32 %s18, 1
        // Predicated region
        $region13: #{tpu_custom_call.1} parent=11 // pred_check
          %p211 = pneg %p65
        $region14: #{tpu_custom_call.1} parent=11 // pred_check_branch
          %213 = sbr.rel (%p211) target = $region16
        $region15: #{tpu_custom_call.1} parent=11 // pred_region
          _
        $region16: #{tpu_custom_call.1} parent=11 // pred_fallthru
          _
        // Predicated region
        $region17: #{tpu_custom_call.1} parent=11 // pred_check
          %p214 = pneg %p86
        $region18: #{tpu_custom_call.1} parent=11 // pred_check_branch
          %216 = sbr.rel (%p214) target = $region20
        $region19: #{tpu_custom_call.1} parent=11 // pred_region
          _
        $region20: #{tpu_custom_call.1} parent=11 // pred_fallthru
          _
        // Predicated region
        $region21: #{tpu_custom_call.1} parent=11 // pred_check
          %p217 = pneg %p107
        $region22: #{tpu_custom_call.1} parent=11 // pred_check_branch
          %219 = sbr.rel (%p217) target = $region24
        $region23: #{tpu_custom_call.1} parent=11 // pred_region
          _
        $region24: #{tpu_custom_call.1} parent=11 // pred_fallthru
          _
        // Predicated region
        $region25: #{tpu_custom_call.1} parent=11 // pred_check
          %p220 = pneg %p128
        $region26: #{tpu_custom_call.1} parent=11 // pred_check_branch
          %222 = sbr.rel (%p220) target = $region28
        $region27: #{tpu_custom_call.1} parent=11 // pred_region
          _
        $region28: #{tpu_custom_call.1} parent=11 // pred_fallthru
          _
        // Predicated region
        $region29: #{tpu_custom_call.1} parent=11 // pred_check
          %p223 = pneg %p149
        $region30: #{tpu_custom_call.1} parent=11 // pred_check_branch
          %225 = sbr.rel (%p223) target = $region32
        $region31: #{tpu_custom_call.1} parent=11 // pred_region
          _
        $region32: #{tpu_custom_call.1} parent=11 // pred_fallthru
          _
        // Predicated region
        $region33: #{tpu_custom_call.1} parent=11 // pred_check
          %p226 = pneg %p170
        $region34: #{tpu_custom_call.1} parent=11 // pred_check_branch
          %228 = sbr.rel (%p226) target = $region36
        $region35: #{tpu_custom_call.1} parent=11 // pred_region
          _
        $region36: #{tpu_custom_call.1} parent=11 // pred_fallthru
          _
      $region12: #{tpu_custom_call.1} parent=5 // pred_fallthru
        _
      %p229 = scmp.lt.s32.totalorder %s18, 2
      // Predicated region
      $region37: #{tpu_custom_call.1} parent=5 // pred_check
        %p230 = pneg %p229
      $region38: #{tpu_custom_call.1} parent=5 // pred_check_branch
        %232 = sbr.rel (%p230) target = $region40
      $region39: #{tpu_custom_call.1} parent=5 // pred_region
        // Predicated region
        $region41: #{tpu_custom_call.1} parent=39 // pred_check
          %p233 = pneg %p38
        $region42: #{tpu_custom_call.1} parent=39 // pred_check_branch
          %235 = sbr.rel (%p233) target = $region44
        $region43: #{tpu_custom_call.1} parent=39 // pred_region
          %p236 = scmp.lt.s32.totalorder %s18, 1
          %s237 = scalar_select %p236, %s18, 1
          %s238 = smul.addr %s237, 4
          %s239 = scalar_lea.vmem %s0, %s238
        $region44: #{tpu_custom_call.1} parent=39 // pred_fallthru
          _
      $region40: #{tpu_custom_call.1} parent=5 // pred_fallthru
        _
      %p240 = scmp.le.s32.totalorder 1, %s18
      %p241 = scmp.lt.s32.totalorder %s18, 3
      %p242 = pnand %p240, %p241
      %p243 = pneg %p242
      // Predicated region
      $region45: #{tpu_custom_call.1} parent=5 // pred_check
        _
      $region46: #{tpu_custom_call.1} parent=5 // pred_check_branch
        %245 = sbr.rel (%p242) target = $region48
      $region47: #{tpu_custom_call.1} parent=5 // pred_region
        %s246 = ssub.s32 %s18, 1
        %p247 = scmp.lt.s32.totalorder %s23, 1
        %s248 = scalar_select %p247, %s23, 1
        %s249 = smul.addr %s248, 4
        %s250 = scalar_lea.vmem %s0, %s249
        %p251 = pneg %p44
        %p252 = pneg %p41
        %p253 = pneg %p65
        %p254 = pneg %p62
        %p255 = pneg %p86
        %p256 = pneg %p83
        %p257 = pneg %p107
        %p258 = pneg %p104
        %p259 = pneg %p128
        %p260 = pneg %p125
        %p261 = pneg %p149
        %p262 = pneg %p146
        %p263 = pneg %p170
        %p264 = pneg %p167
        %p265 = pneg %p196
        %p266 = pneg %p193
        %s267 = sand.u32 %s183, 1
        %s268 = scalar_lea.sflag [#allocation4], %s267
        %s269 = sand.u32 %s183, 1
        %s270 = scalar_lea.vmem [#allocation3], %s269
        %p271 = scmp.lt.s32.totalorder %s23, 1
        %s272 = scalar_select %p271, %s23, 1
        %s273 = smul.addr %s272, 4
        %s274 = scalar_lea.vmem %s0, %s273
        %v275 = vld [vmem:[%s274] sm:$0xf]
        %v276 = vld [vmem:[%s1] sm:$0xff]
        %v277 = vld [vmem:[%s1 + $0x8] sm:$0xff]
        %v278 = vld [vmem:[%s1 + $0x10] sm:$0xff]
        %v279 = vld [vmem:[%s1 + $0x18] sm:$0xff]
        %v280 = vld [vmem:[%s2] sm:$0xff]
        %v281 = vld [vmem:[%s2 + $0x8] sm:$0xff]
        %v282 = vld [vmem:[%s2 + $0x10] sm:$0xff]
        %v283 = vld [vmem:[%s2 + $0x18] sm:$0xff]
        %285 = vset.pattern.permute.xlu0 0
        %286 = vperm.xlu0 %285, %v280
        %v287 = vpop.permute.xlu0 %286
        %290 = vset.pattern.permute.xlu0 0
        %291 = vperm.xlu0 %290, %v281
        %v292 = vpop.permute.xlu0 %291
        %295 = vset.pattern.permute.xlu0 0
        %296 = vperm.xlu0 %295, %v282
        %v297 = vpop.permute.xlu0 %296
        %300 = vset.pattern.permute.xlu0 0
        %301 = vperm.xlu0 %300, %v283
        %v302 = vpop.permute.xlu0 %301
        %vm304 = vcmask 31744
        %v306 = vsel %vm304, %v276, 0
        %v309 = vsel %vm304, %v277, 0
        %v312 = vsel %vm304, %v278, 0
        %v315 = vsel %vm304, %v279, 0
        %vm317 = vcmask 1043456
        %v319 = vsel %vm317, %v275, 0
        %321 = vmatpush.msra.mxu0 0.0
        %322 = vmatpush.msra.mxu0 0.0
        %323 = vmatpush.msra.mxu0 0.0
        %324 = vmatpush.msra.mxu0 0.0
        %325 = vmatpush.msra.mxu0 0.0
        %326 = vmatpush.msra.mxu0 0.0
        %327 = vmatpush.msra.mxu0 0.0
        %328 = vmatpush.msra.mxu0 0.0
        %329 = vmatpush.msra.mxu0 0.0
        %330 = vmatpush.msra.mxu0 0.0
        %331 = vmatpush.msra.mxu0 0.0
        %332 = vmatpush.msra.mxu0 0.0
        %333 = vmatpush.msra.mxu0 0.0
        %334 = vmatpush.msra.mxu0 0.0
        %335 = vmatpush.msra.mxu0 0.0
        %336 = vmatpush.msra.mxu0 %v319
        %337 = vmatmul.f32.gmra.mxu0 %v306
        %v338 = vpop.f32.mrf.mxu0
        %v339 = vadd.f32 %v287, %v338
        %340 = vmatmul.f32.gmra.mxu0 %v309
        %v341 = vpop.f32.mrf.mxu0
        %v342 = vadd.f32 %v292, %v341
        %343 = vmatmul.f32.gmra.mxu0 %v312
        %v344 = vpop.f32.mrf.mxu0
        %v345 = vadd.f32 %v297, %v344
        %346 = vmatmul.f32.gmra.mxu0 %v315
        %v347 = vpop.f32.mrf.mxu0
        %v348 = vadd.f32 %v302, %v347
        %349 = vdwg.mxu0
        %v350 = vtanh.pop %v339
        %v351 = vtanh.pop %v342
        %v352 = vtanh.pop %v345
        %v353 = vtanh.pop %v348
        %v354 = vld [vmem:[%s3] sm:$0xff]
        %v355 = vld [vmem:[%s3 + $0x8] sm:$0xff]
        %v356 = vld [vmem:[%s3 + $0x10] sm:$0xff]
        %v357 = vld [vmem:[%s3 + $0x18] sm:$0xff]
        %v358 = vld [vmem:[%s4] sm:$0xff]
        %v359 = vld [vmem:[%s4 + $0x8] sm:$0xff]
        %v360 = vld [vmem:[%s4 + $0x10] sm:$0xff]
        %v361 = vld [vmem:[%s4 + $0x18] sm:$0xff]
        %363 = vset.pattern.permute.xlu0 0
        %364 = vperm.xlu0 %363, %v358
        %v365 = vpop.permute.xlu0 %364
        %368 = vset.pattern.permute.xlu0 0
        %369 = vperm.xlu0 %368, %v359
        %v370 = vpop.permute.xlu0 %369
        %373 = vset.pattern.permute.xlu0 0
        %374 = vperm.xlu0 %373, %v360
        %v375 = vpop.permute.xlu0 %374
        %378 = vset.pattern.permute.xlu0 0
        %379 = vperm.xlu0 %378, %v361
        %v380 = vpop.permute.xlu0 %379
        %vm382 = vcmask 261120
        %v384 = vsel %vm382, %v354, 0
        %v387 = vsel %vm382, %v355, 0
        %v390 = vsel %vm382, %v356, 0
        %v393 = vsel %vm382, %v357, 0
        %395 = vmatpush.msra.mxu0 0.0
        %396 = vmatpush.msra.mxu0 0.0
        %397 = vmatpush.msra.mxu0 0.0
        %398 = vmatpush.msra.mxu0 0.0
        %399 = vmatpush.msra.mxu0 0.0
        %400 = vmatpush.msra.mxu0 0.0
        %401 = vmatpush.msra.mxu0 0.0
        %402 = vmatpush.msra.mxu0 0.0
        %403 = vmatpush.msra.mxu0 0.0
        %404 = vmatpush.msra.mxu0 0.0
        %405 = vmatpush.msra.mxu0 0.0
        %406 = vmatpush.msra.mxu0 0.0
        %407 = vmatpush.msra.mxu0 %v353
        %408 = vmatpush.msra.mxu0 %v352
        %409 = vmatpush.msra.mxu0 %v351
        %410 = vmatpush.msra.mxu0 %v350
        %411 = vmatmul.f32.gmra.mxu0 %v384
        %v412 = vpop.f32.mrf.mxu0
        %v413 = vadd.f32 %v365, %v412
        %414 = vmatmul.f32.gmra.mxu0 %v387
        %v415 = vpop.f32.mrf.mxu0
        %v416 = vadd.f32 %v370, %v415
        %417 = vmatmul.f32.gmra.mxu0 %v390
        %v418 = vpop.f32.mrf.mxu0
        %v419 = vadd.f32 %v375, %v418
        %420 = vmatmul.f32.gmra.mxu0 %v393
        %v421 = vpop.f32.mrf.mxu0
        %v422 = vadd.f32 %v380, %v421
        %423 = vdwg.mxu0
        %v424 = vtanh.pop %v413
        %v425 = vtanh.pop %v416
        %v426 = vtanh.pop %v419
        %v427 = vtanh.pop %v422
        %v428 = vld [vmem:[%s5] sm:$0xff]
        %v429 = vld [vmem:[%s5 + $0x8] sm:$0xff]
        %v430 = vld [vmem:[%s5 + $0x10] sm:$0xff]
        %v431 = vld [vmem:[%s5 + $0x18] sm:$0xff]
        %v432 = vld [vmem:[#allocation2] sm:$0x1]
        %434 = vset.pattern.permute.xlu0 0
        %435 = vperm.xlu0 %434, %v428
        %v436 = vpop.permute.xlu0 %435
        %439 = vset.pattern.permute.xlu0 0
        %440 = vperm.xlu0 %439, %v429
        %v441 = vpop.permute.xlu0 %440
        %444 = vset.pattern.permute.xlu0 0
        %445 = vperm.xlu0 %444, %v430
        %v446 = vpop.permute.xlu0 %445
        %449 = vset.pattern.permute.xlu0 0
        %450 = vperm.xlu0 %449, %v431
        %v451 = vpop.permute.xlu0 %450
        %v453 = vmul.f32 %v424, %v436
        %v454 = vmul.f32 %v425, %v441
        %v455 = vmul.f32 %v426, %v446
        %v456 = vmul.f32 %v427, %v451
        %v457 = vadd.f32 %v453, %v454
        %v458 = vadd.f32 %v457, %v455
        %v459 = vadd.f32 %v458, %v456
        %v460 = vrot.slane %v459, 4
        %v461 = vadd.f32 %v459, %v460
        %v462 = vrot.slane %v461, 2
        %v463 = vadd.f32 %v461, %v462
        %v464 = vrot.slane %v463, 1
        %v465 = vadd.f32 %v463, %v464
        %467 = vset.pattern.permute.xlu0 0
        %468 = vperm.xlu0 %467, %v432
        %v469 = vpop.permute.xlu0 %468
        %v471 = vperm.slane %v469, 0
        %v472 = vadd.f32 %v465, %v471
        %v473 = vtanh.pop %v472
        %474 = vst [vmem:[%s270] sm:$0x1] %v473
        %s475 = sand.u32 %s183, 1
        %s476 = scalar_lea.sflag [#allocation4], %s475
        %s477 = sand.u32 %s183, 1
        %s478 = scalar_lea.vmem [#allocation3], %s477
        // Predicated region
        $region49: #{tpu_custom_call.1} parent=47 // pred_check
          %p479 = pneg %p193
        $region50: #{tpu_custom_call.1} parent=47 // pred_check_branch
          %481 = sbr.rel (%p479) target = $region52
        $region51: #{tpu_custom_call.1} parent=47 // pred_region
          %483 = vsyncadd %s476, 0
          %s484 = scalar_lea.hbm %s7, %s23
          %s486 = sshll.u32 %s478, 4
          %s487 = int_to_ptr.vmem [resolvable:$true] %s486
          %s488 = sshll.u32 %s484, 4
          %s489 = int_to_ptr.hbm [resolvable:$true] %s488
          %491 = dma.vmem_to_hbm [thread:$0]  %s487, 16, %s489, %s476
        $region52: #{tpu_custom_call.1} parent=47 // pred_fallthru
          _
      $region48: #{tpu_custom_call.1} parent=5 // pred_fallthru
        _
      %p492 = scmp.le.s32.totalorder 2, %s18
      // Predicated region
      $region53: #{tpu_custom_call.1} parent=5 // pred_check
        %p493 = pneg %p492
      $region54: #{tpu_custom_call.1} parent=5 // pred_check_branch
        %495 = sbr.rel (%p493) target = $region56
      $region55: #{tpu_custom_call.1} parent=5 // pred_region
        %s496 = ssub.s32 %s18, 2
        // Predicated region
        $region57: #{tpu_custom_call.1} parent=55 // pred_check
          %p497 = pneg %p199
        $region58: #{tpu_custom_call.1} parent=55 // pred_check_branch
          %499 = sbr.rel (%p497) target = $region60
        $region59: #{tpu_custom_call.1} parent=55 // pred_region
          %s500 = sand.u32 %s184, 1
          %s501 = scalar_lea.sflag [#allocation4], %s500
          %s502 = sand.u32 %s184, 1
          %s503 = scalar_lea.vmem [#allocation3], %s502
          %505 = dma.done %s501, 16
        $region60: #{tpu_custom_call.1} parent=55 // pred_fallthru
          _
      $region56: #{tpu_custom_call.1} parent=5 // pred_fallthru
        _
    $region6: #{tpu_custom_call.1} parent=1 // loop_footer
      %s22 = sadd.s32 1, %s18
    $region7: #{tpu_custom_call.1} parent=1 // loop_footer_branch
      %17 = sbr.rel target = $region3
    $region8: #{tpu_custom_call.1} parent=1 // loop_exit
      _
    %506 = vsyncpa [#allocation4], 1
    %s507 = scalar_lea.sflag [#allocation4], 1
    %508 = vsyncpa %s507, 1

</llo_original>
